<compile_context>
chip_gen: v6e
topology: v6e:2x2x1
jax: 0.10.0
libtpu: 0.0.40
codegen_flags: <defaults>
</compile_context>

<pallas_src>
import jax
import jax.numpy as jnp
from jax.experimental import pallas as pl
from jax.experimental.pallas import tpu as pltpu


def _memory_kernel(mem_ref, key_ref, val_ref, out_ref):
    """One Memory application (one grid step / one instance)."""
    # S = memory @ key -> (num_slots, batch); bf16 operands, f32 accumulation.
    s = jnp.dot(
        mem_ref[...].astype(jnp.bfloat16),
        key_ref[...].astype(jnp.bfloat16),
        preferred_element_type=jnp.float32,
    )

    # Numerically stable softmax over axis 0 (num_slots), kept in f32
    # (v5e VPU/EUP have no bf16 path; softmax precision matters).
    m = jnp.max(s, axis=0, keepdims=True)
    p = jnp.exp(s - m)
    denom = jnp.sum(p, axis=0, keepdims=True)
    w = p * pl.reciprocal(denom, approx=True)

    # out = softmax(S) @ value -> (num_slots, value_dim_padded).
    out = jnp.dot(
        w.astype(jnp.bfloat16),
        val_ref[...].astype(jnp.bfloat16),
        preferred_element_type=jnp.float32,
    )
    out_ref[...] = out.astype(out_ref.dtype)


@jax.jit
def memory_forward_batched(memory, keys, values):
    """Batched Memory forward: all instances in a single pallas_call.

    memory : (num_slots, slot_size)             -- shared parameter
    keys   : (num_instances, slot_size, batch)
    values : (num_instances, batch, value_dim)
    returns: (num_instances, num_slots, value_dim)
    """
    num_slots, slot_size = memory.shape
    num_instances, slot_size_k, batch = keys.shape
    num_instances_v, batch_v, value_dim = values.shape
    assert slot_size == slot_size_k
    assert batch == batch_v
    assert num_instances == num_instances_v

    # Lane-dense output: pad value_dim up to a multiple of 128 so the store
    # is full-width vst rather than a masked 32/128-lane partial store.
    vp = ((value_dim + 127) // 128) * 128
    if vp != value_dim:
        values = jnp.pad(values, ((0, 0), (0, 0), (0, vp - value_dim)))

    out = pl.pallas_call(
        _memory_kernel,
        out_shape=jax.ShapeDtypeStruct((num_instances, num_slots, vp),
                                       memory.dtype),
        grid=(num_instances,),
        in_specs=[
            # Shared memory parameter: same (full-extent) block every step.
            pl.BlockSpec((num_slots, slot_size), lambda i: (0, 0)),
            # Per-instance key / value (leading instance dim squeezed away).
            pl.BlockSpec((None, slot_size, batch), lambda i: (i, 0, 0)),
            pl.BlockSpec((None, batch, vp), lambda i: (i, 0, 0)),
        ],
        out_specs=pl.BlockSpec((None, num_slots, vp), lambda i: (i, 0, 0)),
        compiler_params=pltpu.CompilerParams(
            # Instances are independent -> shard grid axis across TCs.
            dimension_semantics=("parallel",),
        ),
    )(memory, keys, values)

    if vp != value_dim:
        out = out[:, :, :value_dim]
    return out


def memory_forward(memory, key, value):
    """Single-instance forward: identical semantics to Memory.forward."""
    return memory_forward_batched(memory, key[None], value[None])[0]


def _reference_f32(memory, key, value):
    # Exact f32 semantics of the PyTorch module (for documentation).
    s = memory @ key
    w = jax.nn.softmax(s, axis=0)
    return w @ value


def _reference_bf16(memory, key, value):
    # Reference at the kernel's intentional precision: bf16 MXU operands,
    # f32 accumulation, f32 softmax.
    s = jnp.dot(memory.astype(jnp.bfloat16), key.astype(jnp.bfloat16),
                preferred_element_type=jnp.float32)
    w = jax.nn.softmax(s, axis=0)
    return jnp.dot(w.astype(jnp.bfloat16), value.astype(jnp.bfloat16),
                   preferred_element_type=jnp.float32)


if __name__ == "__main__":
    # Small shapes consistent with the module; value_dim chosen lane-dense.
    num_slots, slot_size, batch, value_dim = 16, 32, 8, 128
    num_instances = 4

    k0, k1, k2, k3 = jax.random.split(jax.random.PRNGKey(0), 4)
    memory = jax.random.normal(k0, (num_slots, slot_size), dtype=jnp.float32)
    keys = jax.random.normal(k1, (num_instances, slot_size, batch),
                             dtype=jnp.float32)
    values = jax.random.normal(k2, (num_instances, batch, value_dim),
                               dtype=jnp.float32)

    # Batched hot path: all instances in one pallas_call.
    out = jax.block_until_ready(memory_forward_batched(memory, keys, values))
    assert out.shape == (num_instances, num_slots, value_dim)
    ref = jax.vmap(_reference_bf16, in_axes=(None, 0, 0))(memory, keys, values)
    assert jnp.allclose(out, ref, atol=5e-2, rtol=5e-2), \
        float(jnp.max(jnp.abs(out - ref)))

    # Single-instance path == the PyTorch module's forward(key, value).
    out1 = jax.block_until_ready(memory_forward(memory, keys[0], values[0]))
    assert out1.shape == (num_slots, value_dim)
    assert jnp.allclose(out1, ref[0], atol=5e-2, rtol=5e-2)

    # Narrow value_dim exercises the lane-padding path.
    v_small = jax.random.normal(k3, (batch, 32), dtype=jnp.float32)
    out_small = jax.block_until_ready(memory_forward(memory, keys[0], v_small))
    assert out_small.shape == (num_slots, 32)
    ref_small = _reference_bf16(memory, keys[0], v_small)
    assert jnp.allclose(out_small, ref_small, atol=5e-2, rtol=5e-2)

    print("KERNEL_OK")
</pallas_src>

<mosaic_0001>
module attributes {stable_mosaic.version = 11 : i64} {
  func.func @_memory_kernel(%arg0: i32, %arg1: memref<16x32xf32, #tpu.memory_space<vmem>>, %arg2: memref<1x32x8xf32, #tpu.memory_space<vmem>>, %arg3: memref<1x8x128xf32, #tpu.memory_space<vmem>>, %arg4: memref<1x16x128xf32, #tpu.memory_space<vmem>>) attributes {dimension_semantics = [#tpu.dimension_semantics<parallel>], iteration_bounds = array<i64: 4>, scalar_prefetch = 0 : i64, scratch_operands = 0 : i64, tpu.core_type = #tpu.core_type<tc>, window_params = [{pipeline_mode = #tpu.pipeline_mode<synchronous>, transform_indices = @transform_0, window_bounds = array<i64: 16, 32>}, {transform_indices = @transform_1, window_bounds = array<i64: 1, 32, 8>}, {transform_indices = @transform_2, window_bounds = array<i64: 1, 8, 128>}, {transform_indices = @transform_3, window_bounds = array<i64: 1, 16, 128>}]} {
    %c0 = arith.constant 0 : index
    %c0_0 = arith.constant 0 : index
    %0 = vector.load %arg1[%c0, %c0_0] : memref<16x32xf32, #tpu.memory_space<vmem>>, vector<16x32xf32>
    %1 = arith.truncf %0 : vector<16x32xf32> to vector<16x32xbf16>
    %c0_1 = arith.constant 0 : index
    %c0_2 = arith.constant 0 : index
    %c0_3 = arith.constant 0 : index
    %2 = vector.load %arg2[%c0_1, %c0_2, %c0_3] : memref<1x32x8xf32, #tpu.memory_space<vmem>>, vector<1x32x8xf32>
    %3 = vector.shape_cast %2 : vector<1x32x8xf32> to vector<32x8xf32>
    %4 = arith.truncf %3 : vector<32x8xf32> to vector<32x8xbf16>
    %cst = arith.constant dense<0.000000e+00> : vector<16x8xf32>
    %5 = tpu.matmul %1, %4, %cst {dimension_numbers = #tpu.dot_dimension_numbers<[1], [0], [0], [1], [0, 0, 1, 1], [], []>} : vector<16x32xbf16>, vector<32x8xbf16>, vector<16x8xf32> -> vector<16x8xf32>
    %cst_4 = arith.constant dense<0xFF800000> : vector<8xf32>
    %6 = vector.multi_reduction <maximumf>, %5, %cst_4 [0] : vector<16x8xf32> to vector<8xf32>
    %7 = vector.shape_cast %6 : vector<8xf32> to vector<1x8xf32>
    %8 = vector.broadcast %7 : vector<1x8xf32> to vector<16x8xf32>
    %9 = arith.subf %5, %8 : vector<16x8xf32>
    %10 = math.exp %9 : vector<16x8xf32>
    %cst_5 = arith.constant dense<0.000000e+00> : vector<8xf32>
    %11 = vector.multi_reduction <add>, %10, %cst_5 [0] : vector<16x8xf32> to vector<8xf32>
    %12 = vector.shape_cast %11 : vector<8xf32> to vector<1x8xf32>
    %13 = tpu.reciprocal %12 {approx = true} : vector<1x8xf32> -> vector<1x8xf32>
    %14 = vector.broadcast %13 : vector<1x8xf32> to vector<16x8xf32>
    %15 = arith.mulf %10, %14 : vector<16x8xf32>
    %16 = arith.truncf %15 : vector<16x8xf32> to vector<16x8xbf16>
    %c0_6 = arith.constant 0 : index
    %c0_7 = arith.constant 0 : index
    %c0_8 = arith.constant 0 : index
    %17 = vector.load %arg3[%c0_6, %c0_7, %c0_8] : memref<1x8x128xf32, #tpu.memory_space<vmem>>, vector<1x8x128xf32>
    %18 = vector.shape_cast %17 : vector<1x8x128xf32> to vector<8x128xf32>
    %19 = arith.truncf %18 : vector<8x128xf32> to vector<8x128xbf16>
    %cst_9 = arith.constant dense<0.000000e+00> : vector<16x128xf32>
    %20 = tpu.matmul %16, %19, %cst_9 {dimension_numbers = #tpu.dot_dimension_numbers<[1], [0], [0], [1], [0, 0, 1, 1], [], []>} : vector<16x8xbf16>, vector<8x128xbf16>, vector<16x128xf32> -> vector<16x128xf32>
    %c0_10 = arith.constant 0 : index
    %c0_11 = arith.constant 0 : index
    %c0_12 = arith.constant 0 : index
    %21 = vector.load %arg4[%c0_10, %c0_11, %c0_12] : memref<1x16x128xf32, #tpu.memory_space<vmem>>, vector<1x16x128xf32>
    %22 = vector.shape_cast %21 : vector<1x16x128xf32> to vector<16x128xf32>
    %23 = vector.shape_cast %20 : vector<16x128xf32> to vector<1x16x128xf32>
    tpu.vector_store %arg4[%c0_10, %c0_11, %c0_12], %23 {strides = array<i32>} : memref<1x16x128xf32, #tpu.memory_space<vmem>>, vector<1x16x128xf32>,
    return
  }
  func.func @transform_0(%arg0: i32) -> (i32, i32) {
    %c0_i32 = arith.constant 0 : i32
    %c0_i32_0 = arith.constant 0 : i32
    %c0_i32_1 = arith.constant 0 : i32
    return %c0_i32, %c0_i32_0 : i32, i32
  }
  func.func @transform_1(%arg0: i32) -> (i32, i32, i32) {
    %c0_i32 = arith.constant 0 : i32
    %c0_i32_0 = arith.constant 0 : i32
    %c0_i32_1 = arith.constant 0 : i32
    return %arg0, %c0_i32, %c0_i32_0 : i32, i32, i32
  }
  func.func @transform_2(%arg0: i32) -> (i32, i32, i32) {
    %c0_i32 = arith.constant 0 : i32
    %c0_i32_0 = arith.constant 0 : i32
    %c0_i32_1 = arith.constant 0 : i32
    return %arg0, %c0_i32, %c0_i32_0 : i32, i32, i32
  }
  func.func @transform_3(%arg0: i32) -> (i32, i32, i32) {
    %c0_i32 = arith.constant 0 : i32
    %c0_i32_0 = arith.constant 0 : i32
    %c0_i32_1 = arith.constant 0 : i32
    return %arg0, %c0_i32, %c0_i32_0 : i32, i32, i32
  }
}

</mosaic_0001>

<llo_original>
// kernel: memory_forward_batched.1
$region0: #{memory_forward_batched.1}
  #allocation0 [shape = 'u32[]', space=smem, size = 0x4, offset = 0x4, fixed_abs, tag = 'smem constant byte address 0x4 - core index']
  #allocation1 [shape = 'u32[144,128]{1,0:T(1,128)}', space=vmem, size = 0x12000, scoped, tag = 'internal scratch']
  %s0 = inlined_call_operand.vmem [shape: f32[16,32], index: 0, kind: input, shape index: {}]
  %s1 = inlined_call_operand.vmem [shape: f32[4,32,8], index: 1, kind: input, shape index: {}]
  %s2 = inlined_call_operand.vmem [shape: f32[4,8,128], index: 2, kind: input, shape index: {}]
  %s3 = inlined_call_operand.hbm [shape: f32[4,16,128], index: 3, kind: output, shape index: {}]
  %s4 = sld [smem:[#allocation0]]
  $region45: #{memory_forward_batched.1} parent=0
    _
  %s6 = ssub.s32 1, %s4
  %s7 = scalar_select 0, %s6, %s4
  $region1: #{memory_forward_batched.1} parent=0
    #allocation2 [shape = 'u8[16384]{0}', space=vmem, size = 0x4000, scoped, tag = 'output window, operand 0']
    #allocation3 [shape = 's32[2]{0}', space=sflag, size = 0x8, scoped, tag = 'scoped memory for memory_forward_batched.1']
    %8 = vsyncpa [#allocation3], 0
    %s9 = scalar_lea.sflag [#allocation3], 1
    %10 = vsyncpa %s9, 0
    loop: start=0, step=1, limit=6
    $region2: #{memory_forward_batched.1} parent=1 // loop_pre_header
      _
    $region3: #{memory_forward_batched.1} parent=1 // loop_header
      %s12 = sphi 0, %s16
      %p13 = scmp.ge.s32.totalorder %s12, 6
      %s20 = sphi 0, %s20
      %s22 = sphi 0, %s20
      %s23 = sphi 0, %s22
      %s37 = sphi 0, %s23
      %s43 = sphi 0, %s45
      %s46 = sphi 0, %s43
      %s47 = sphi 0, %s46
      %s63 = sphi 0, %s47
      %s69 = sphi 0, %s71
      %s72 = sphi 0, %s69
      %s73 = sphi 0, %s72
      %s89 = sphi 0, %s73
      %s95 = sphi 0, %s97
      %s98 = sphi 0, %s95
      %s99 = sphi 0, %s98
      %s115 = sphi 0, %s99
    $region4: #{memory_forward_batched.1} parent=1 // loop_header_branch
      %15 = sbr.rel (%p13) target = $region8
    $region5: #{memory_forward_batched.1} parent=1 // loop_body
      %s17 = ssub.s32 %s12, 1
      %s18 = ssub.s32 %s12, 2
      %s19 = sadd.s32 %s12, 1
      %s21 = sadd.s32 %s20, 1
      %p24 = scmp.eq.s32.totalorder %s12, 3
      %p25 = scmp.ne.s32.totalorder %s20, %s22
      %p26 = scmp.eq.s32.totalorder %s12, 0
      %p27 = por %p25, %p26
      %p28 = scmp.ne.s32.totalorder %s20, %s22
      %p29 = scmp.eq.s32.totalorder %s17, 3
      %p30 = por %p28, %p29
      %p31 = scmp.ne.s32.totalorder %s22, %s23
      %p32 = scmp.eq.s32.totalorder %s17, 0
      %p33 = por %p31, %p32
      %p34 = scmp.ne.s32.totalorder %s22, %s23
      %p35 = scmp.eq.s32.totalorder %s18, 3
      %p36 = por %p34, %p35
      %p38 = scmp.ne.s32.totalorder %s23, %s37
      %p39 = scmp.eq.s32.totalorder %s18, 0
      %p40 = por %p38, %p39
      %s41 = ssub.s32 %s12, %s19
      %p42 = scmp.eq.s32.totalorder %s41, 0
      %s44 = sadd.s32 %s43, 1
      %s45 = scalar_select %p42, %s43, %s44
      %p48 = pneg %p42
      %p49 = scmp.eq.s32.totalorder %s12, 3
      %p50 = por %p48, %p49
      %p51 = scmp.ne.s32.totalorder %s43, %s46
      %p52 = scmp.eq.s32.totalorder %s12, 0
      %p53 = por %p51, %p52
      %p54 = scmp.ne.s32.totalorder %s43, %s46
      %p55 = scmp.eq.s32.totalorder %s17, 3
      %p56 = por %p54, %p55
      %p57 = scmp.ne.s32.totalorder %s46, %s47
      %p58 = scmp.eq.s32.totalorder %s17, 0
      %p59 = por %p57, %p58
      %p60 = scmp.ne.s32.totalorder %s46, %s47
      %p61 = scmp.eq.s32.totalorder %s18, 3
      %p62 = por %p60, %p61
      %p64 = scmp.ne.s32.totalorder %s47, %s63
      %p65 = scmp.eq.s32.totalorder %s18, 0
      %p66 = por %p64, %p65
      %s67 = ssub.s32 %s12, %s19
      %p68 = scmp.eq.s32.totalorder %s67, 0
      %s70 = sadd.s32 %s69, 1
      %s71 = scalar_select %p68, %s69, %s70
      %p74 = pneg %p68
      %p75 = scmp.eq.s32.totalorder %s12, 3
      %p76 = por %p74, %p75
      %p77 = scmp.ne.s32.totalorder %s69, %s72
      %p78 = scmp.eq.s32.totalorder %s12, 0
      %p79 = por %p77, %p78
      %p80 = scmp.ne.s32.totalorder %s69, %s72
      %p81 = scmp.eq.s32.totalorder %s17, 3
      %p82 = por %p80, %p81
      %p83 = scmp.ne.s32.totalorder %s72, %s73
      %p84 = scmp.eq.s32.totalorder %s17, 0
      %p85 = por %p83, %p84
      %p86 = scmp.ne.s32.totalorder %s72, %s73
      %p87 = scmp.eq.s32.totalorder %s18, 3
      %p88 = por %p86, %p87
      %p90 = scmp.ne.s32.totalorder %s73, %s89
      %p91 = scmp.eq.s32.totalorder %s18, 0
      %p92 = por %p90, %p91
      %s93 = ssub.s32 %s12, %s19
      %p94 = scmp.eq.s32.totalorder %s93, 0
      %s96 = sadd.s32 %s95, 1
      %s97 = scalar_select %p94, %s95, %s96
      %p100 = pneg %p94
      %p101 = scmp.eq.s32.totalorder %s12, 3
      %p102 = por %p100, %p101
      %p103 = scmp.ne.s32.totalorder %s95, %s98
      %p104 = scmp.eq.s32.totalorder %s12, 0
      %p105 = por %p103, %p104
      %p106 = scmp.ne.s32.totalorder %s95, %s98
      %p107 = scmp.eq.s32.totalorder %s17, 3
      %p108 = por %p106, %p107
      %p109 = scmp.ne.s32.totalorder %s98, %s99
      %p110 = scmp.eq.s32.totalorder %s17, 0
      %p111 = por %p109, %p110
      %p112 = scmp.ne.s32.totalorder %s98, %s99
      %p113 = scmp.eq.s32.totalorder %s18, 3
      %p114 = por %p112, %p113
      %p116 = scmp.ne.s32.totalorder %s99, %s115
      %p117 = scmp.eq.s32.totalorder %s18, 0
      %p118 = por %p116, %p117
      %p119 = scmp.le.s32.totalorder 1, %s12
      %p120 = scmp.lt.s32.totalorder %s12, 5
      %p121 = pnand %p119, %p120
      %p122 = pneg %p121
      // Predicated region
      $region9: #{memory_forward_batched.1} parent=5 // pred_check
        _
      $region10: #{memory_forward_batched.1} parent=5 // pred_check_branch
        %124 = sbr.rel (%p121) target = $region12
      $region11: #{memory_forward_batched.1} parent=5 // pred_region
        %s125 = ssub.s32 %s12, 1
        // Predicated region
        $region13: #{memory_forward_batched.1} parent=11 // pred_check
          %p126 = pneg %p33
        $region14: #{memory_forward_batched.1} parent=11 // pred_check_branch
          %128 = sbr.rel (%p126) target = $region16
        $region15: #{memory_forward_batched.1} parent=11 // pred_region
          _
        $region16: #{memory_forward_batched.1} parent=11 // pred_fallthru
          _
      $region12: #{memory_forward_batched.1} parent=5 // pred_fallthru
        _
      %p129 = scmp.lt.s32.totalorder %s12, 4
      // Predicated region
      $region17: #{memory_forward_batched.1} parent=5 // pred_check
        %p130 = pneg %p129
      $region18: #{memory_forward_batched.1} parent=5 // pred_check_branch
        %132 = sbr.rel (%p130) target = $region20
      $region19: #{memory_forward_batched.1} parent=5 // pred_region
        // Predicated region
        $region21: #{memory_forward_batched.1} parent=19 // pred_check
          %p133 = pneg %p53
        $region22: #{memory_forward_batched.1} parent=19 // pred_check_branch
          %135 = sbr.rel (%p133) target = $region24
        $region23: #{memory_forward_batched.1} parent=19 // pred_region
          %p136 = scmp.lt.s32.totalorder %s12, 3
          %s137 = scalar_select %p136, %s12, 3
          %s138 = smul.addr %s137, 4
          %s139 = smul.addr %s138, 8
          %s140 = scalar_lea.vmem %s1, %s139
        $region24: #{memory_forward_batched.1} parent=19 // pred_fallthru
          _
        // Predicated region
        $region25: #{memory_forward_batched.1} parent=19 // pred_check
          %p141 = pneg %p79
        $region26: #{memory_forward_batched.1} parent=19 // pred_check_branch
          %143 = sbr.rel (%p141) target = $region28
        $region27: #{memory_forward_batched.1} parent=19 // pred_region
          %p144 = scmp.lt.s32.totalorder %s12, 3
          %s145 = scalar_select %p144, %s12, 3
          %s146 = smul.addr %s145, 8
          %s147 = scalar_lea.vmem %s2, %s146
        $region28: #{memory_forward_batched.1} parent=19 // pred_fallthru
          _
      $region20: #{memory_forward_batched.1} parent=5 // pred_fallthru
        _
      %p148 = scmp.le.s32.totalorder 1, %s12
      %p149 = scmp.lt.s32.totalorder %s12, 5
      %p150 = pnand %p148, %p149
      %p151 = pneg %p150
      // Predicated region
      $region29: #{memory_forward_batched.1} parent=5 // pred_check
        _
      $region30: #{memory_forward_batched.1} parent=5 // pred_check_branch
        %153 = sbr.rel (%p150) target = $region32
      $region31: #{memory_forward_batched.1} parent=5 // pred_region
        %s154 = ssub.s32 %s12, 1
        %p155 = pneg %p33
        %p156 = pneg %p30
        %p157 = scmp.lt.s32.totalorder %s17, 3
        %s158 = scalar_select %p157, %s17, 3
        %s159 = smul.addr %s158, 4
        %s160 = smul.addr %s159, 8
        %s161 = scalar_lea.vmem %s1, %s160
        %p162 = pneg %p59
        %p163 = pneg %p56
        %p164 = scmp.lt.s32.totalorder %s17, 3
        %s165 = scalar_select %p164, %s17, 3
        %s166 = smul.addr %s165, 8
        %s167 = scalar_lea.vmem %s2, %s166
        %p168 = pneg %p85
        %p169 = pneg %p82
        %p170 = pneg %p111
        %p171 = pneg %p108
        %s172 = sand.u32 %s98, 1
        %s173 = scalar_lea.sflag [#allocation3], %s172
        %s174 = sand.u32 %s98, 1
        %s175 = smul.addr %s174, 16
        %s176 = scalar_lea.vmem [#allocation2], %s175
        %p177 = scmp.lt.s32.totalorder %s17, 3
        %s178 = scalar_select %p177, %s17, 3
        %s179 = smul.addr %s178, 4
        %s180 = smul.addr %s179, 8
        %s181 = scalar_lea.vmem %s1, %s180
        %p182 = scmp.lt.s32.totalorder %s17, 3
        %s183 = scalar_select %p182, %s17, 3
        %s184 = smul.addr %s183, 8
        %s185 = scalar_lea.vmem %s2, %s184
        %v187 = vld [vmem:[%s0] sm:$0xff]
        %v188 = vld [vmem:[%s0 + $0x8] sm:$0xff]
        %v189 = vpack.c.bf16 %v188, %v187
        %v190 = vld [vmem:[%s181] sm:$0xff]
        %v191 = vld [vmem:[%s181 + $0x8] sm:$0xff]
        %v192 = vld [vmem:[%s181 + $0x10] sm:$0xff]
        %v193 = vld [vmem:[%s181 + $0x18] sm:$0xff]
        %v194 = vpack.c.bf16 %v191, %v190
        %v195 = vpack.c.bf16 %v193, %v192
        %vm196 = vcmask 261120
        %v198 = vsel %vm196, %v189, 0
        %200 = vmatprep.subr.bf16.mxu0 0
        %201 = vmatpush1.bf16.msra.mxu0 0
        %202 = vmatprep.subr.bf16.mxu0 0
        %203 = vmatpush1.bf16.msra.mxu0 0
        %204 = vmatprep.subr.bf16.mxu0 0
        %205 = vmatpush1.bf16.msra.mxu0 0
        %206 = vmatprep.subr.bf16.mxu0 0
        %207 = vmatpush1.bf16.msra.mxu0 0
        %208 = vmatprep.subr.bf16.mxu0 0
        %209 = vmatpush1.bf16.msra.mxu0 0
        %210 = vmatprep.subr.bf16.mxu0 0
        %211 = vmatpush1.bf16.msra.mxu0 0
        %212 = vmatprep.subr.bf16.mxu0 0
        %213 = vmatpush1.bf16.msra.mxu0 %v195
        %214 = vmatprep.subr.bf16.mxu0 0
        %215 = vmatpush1.bf16.msra.mxu0 %v194
        %216 = vmatprep.subr.bf16.mxu0 0
        %217 = vmatpush2.bf16.msra.mxu0 0
        %218 = vmatprep.subr.bf16.mxu0 0
        %219 = vmatpush2.bf16.msra.mxu0 0
        %220 = vmatprep.subr.bf16.mxu0 0
        %221 = vmatpush2.bf16.msra.mxu0 0
        %222 = vmatprep.subr.bf16.mxu0 0
        %223 = vmatpush2.bf16.msra.mxu0 0
        %224 = vmatprep.subr.bf16.mxu0 0
        %225 = vmatpush2.bf16.msra.mxu0 0
        %226 = vmatprep.subr.bf16.mxu0 0
        %227 = vmatpush2.bf16.msra.mxu0 0
        %228 = vmatprep.subr.bf16.mxu0 0
        %229 = vmatpush2.bf16.msra.mxu0 0
        %230 = vmatprep.subr.bf16.mxu0 0
        %231 = vmatpush2.bf16.msra.mxu0 0
        %232 = vmatprep.mubr.bf16.mxu0 0
        %233 = vmatmul.mubr.bf16.gmra.mxu0 %v198
        %v234 = vpop.f32.mrf.mxu0
        %v235 = vadd.f32 0.0, %v234
        %v236 = vpop.f32.mrf.mxu0
        %v237 = vpop.f32.mrf.mxu0
        %v238 = vadd.f32 0.0, %v237
        %v239 = vpop.f32.mrf.mxu0
        %240 = vdwg.mxu0
        %vm241 = vcmask 64512
        %v242 = vsel %vm241, %v235, -inf
        %v243 = vsel %vm241, %v238, -inf
        %v244 = vmax.f32 %v242, %v243
        %v245 = vrot.slane %v244, 4
        %v246 = vmax.f32 %v244, %v245
        %v247 = vrot.slane %v246, 2
        %v248 = vmax.f32 %v246, %v247
        %v249 = vrot.slane %v248, 1
        %v250 = vmax.f32 %v248, %v249
        %v251 = vsub.f32 %v235, %v250
        %v252 = vsub.f32 %v238, %v250
        %v253 = vmul.f32 %v251, 1.442695
        %v254 = vpow.pop %v253
        %v255 = vmul.f32 %v252, 1.442695
        %v256 = vpow.pop %v255
        %v257 = vsel %vm241, %v254, 0.0
        %v258 = vsel %vm241, %v256, 0.0
        %v259 = vadd.f32 %v257, %v258
        %v260 = vrot.slane %v259, 4
        %v261 = vadd.f32 %v259, %v260
        %v262 = vrot.slane %v261, 2
        %v263 = vadd.f32 %v261, %v262
        %v264 = vrot.slane %v263, 1
        %v265 = vadd.f32 %v263, %v264
        %v266 = vrcp.pop %v265
        %v267 = vmul.f32 %v254, %v266
        %v268 = vmul.f32 %v256, %v266
        %v269 = vpack.c.bf16 %v268, %v267
        %v270 = vld [vmem:[%s185] sm:$0xff]
        %v271 = vpack.c.bf16 %v270, %v270
        %v273 = vsel %vm241, %v269, 0
        %vm275 = vcmask 1043456
        %v277 = vsel %vm275, %v271, 0
        %279 = vmatprep.subr.bf16.mxu0 0
        %280 = vmatpush1.bf16.msra.mxu0 0
        %281 = vmatprep.subr.bf16.mxu0 0
        %282 = vmatpush1.bf16.msra.mxu0 0
        %283 = vmatprep.subr.bf16.mxu0 0
        %284 = vmatpush1.bf16.msra.mxu0 0
        %285 = vmatprep.subr.bf16.mxu0 0
        %286 = vmatpush1.bf16.msra.mxu0 0
        %287 = vmatprep.subr.bf16.mxu0 0
        %288 = vmatpush1.bf16.msra.mxu0 0
        %289 = vmatprep.subr.bf16.mxu0 0
        %290 = vmatpush1.bf16.msra.mxu0 0
        %291 = vmatprep.subr.bf16.mxu0 0
        %292 = vmatpush1.bf16.msra.mxu0 0
        %293 = vmatprep.subr.bf16.mxu0 0
        %294 = vmatpush1.bf16.msra.mxu0 %v277
        %295 = vmatprep.subr.bf16.mxu0 0
        %296 = vmatpush2.bf16.msra.mxu0 0
        %297 = vmatprep.subr.bf16.mxu0 0
        %298 = vmatpush2.bf16.msra.mxu0 0
        %299 = vmatprep.subr.bf16.mxu0 0
        %300 = vmatpush2.bf16.msra.mxu0 0
        %301 = vmatprep.subr.bf16.mxu0 0
        %302 = vmatpush2.bf16.msra.mxu0 0
        %303 = vmatprep.subr.bf16.mxu0 0
        %304 = vmatpush2.bf16.msra.mxu0 0
        %305 = vmatprep.subr.bf16.mxu0 0
        %306 = vmatpush2.bf16.msra.mxu0 0
        %307 = vmatprep.subr.bf16.mxu0 0
        %308 = vmatpush2.bf16.msra.mxu0 0
        %309 = vmatprep.subr.bf16.mxu0 0
        %310 = vmatpush2.bf16.msra.mxu0 0
        %311 = vmatprep.mubr.bf16.mxu0 0
        %312 = vmatmul.mubr.bf16.gmra.mxu0 %v273
        %v313 = vpop.f32.mrf.mxu0
        %v314 = vadd.f32 0.0, %v313
        %v315 = vpop.f32.mrf.mxu0
        %v316 = vpop.f32.mrf.mxu0
        %v317 = vadd.f32 0.0, %v316
        %v318 = vpop.f32.mrf.mxu0
        %319 = vdwg.mxu0
        %320 = vst [vmem:[%s176] sm:$0xff] %v314
        %321 = vst [vmem:[%s176 + $0x8] sm:$0xff] %v317
        %s322 = sand.u32 %s98, 1
        %s323 = scalar_lea.sflag [#allocation3], %s322
        %s324 = sand.u32 %s98, 1
        %s325 = smul.addr %s324, 16
        %s326 = scalar_lea.vmem [#allocation2], %s325
        // Predicated region
        $region33: #{memory_forward_batched.1} parent=31 // pred_check
          %p327 = pneg %p108
        $region34: #{memory_forward_batched.1} parent=31 // pred_check_branch
          %329 = sbr.rel (%p327) target = $region36
        $region35: #{memory_forward_batched.1} parent=31 // pred_region
          %s331 = ssub.s32 256, 256
          %332 = vsyncadd %s323, %s331
          %s333 = smul.addr %s17, 2
          %s334 = smul.addr %s333, 128
          %s335 = scalar_lea.hbm %s3, %s334
          %s336 = sshll.u32 %s326, 4
          %s337 = int_to_ptr.vmem [resolvable:$true] %s336
          %342 = dma.vmem_to_hbm [thread:$0]  %s337, 256, %s335, %s323, 128, 128, 8
        $region36: #{memory_forward_batched.1} parent=31 // pred_fallthru
          _
      $region32: #{memory_forward_batched.1} parent=5 // pred_fallthru
        _
      %p343 = scmp.le.s32.totalorder 2, %s12
      // Predicated region
      $region37: #{memory_forward_batched.1} parent=5 // pred_check
        %p344 = pneg %p343
      $region38: #{memory_forward_batched.1} parent=5 // pred_check_branch
        %346 = sbr.rel (%p344) target = $region40
      $region39: #{memory_forward_batched.1} parent=5 // pred_region
        %s347 = ssub.s32 %s12, 2
        // Predicated region
        $region41: #{memory_forward_batched.1} parent=39 // pred_check
          %p348 = pneg %p114
        $region42: #{memory_forward_batched.1} parent=39 // pred_check_branch
          %350 = sbr.rel (%p348) target = $region44
        $region43: #{memory_forward_batched.1} parent=39 // pred_region
          %s351 = sand.u32 %s99, 1
          %s352 = scalar_lea.sflag [#allocation3], %s351
          %s353 = sand.u32 %s99, 1
          %s354 = smul.addr %s353, 16
          %s355 = scalar_lea.vmem [#allocation2], %s354
          %356 = dma.done %s352, 256
        $region44: #{memory_forward_batched.1} parent=39 // pred_fallthru
          _
      $region40: #{memory_forward_batched.1} parent=5 // pred_fallthru
        _
    $region6: #{memory_forward_batched.1} parent=1 // loop_footer
      %s16 = sadd.s32 1, %s12
    $region7: #{memory_forward_batched.1} parent=1 // loop_footer_branch
      %11 = sbr.rel target = $region3
    $region8: #{memory_forward_batched.1} parent=1 // loop_exit
      _
    %357 = vsyncpa [#allocation3], 1
    %s358 = scalar_lea.sflag [#allocation3], 1
    %359 = vsyncpa %s358, 1

</llo_original>
